<compile_context>
chip_gen: v7x
topology: tpu7x:2x2x1
jax: 0.10.0
libtpu: 0.0.40
codegen_flags: <defaults>
</compile_context>

<pallas_src>
import jax
import jax.numpy as jnp
from jax.experimental import pallas as pl
from jax.experimental.pallas import tpu as pltpu

_HALF_LOG_2PI = 0.5 * float(jnp.log(2.0 * jnp.pi))


# ----------------------------- kernels -------------------------------------


def _mu_from_obs(obs_ref, w1_ref, b1_ref, w2_ref, b2_ref, w3_ref, b3_ref):
    # Layers 1-2 on the MXU with bf16 operands / f32 accumulation; the tiny
    # final layer (K=h2d, N=act_dim) uses f32 operands for accuracy (free).
    x = obs_ref[...].astype(jnp.bfloat16)
    h1 = jnp.tanh(
        jnp.dot(x, w1_ref[...], preferred_element_type=jnp.float32) + b1_ref[...])
    h2 = jnp.tanh(
        jnp.dot(h1.astype(jnp.bfloat16), w2_ref[...],
                preferred_element_type=jnp.float32) + b2_ref[...])
    return jnp.dot(h2, w3_ref[...], preferred_element_type=jnp.float32) + b3_ref[...]


def _actor_mu_kernel(obs_ref, w1_ref, b1_ref, w2_ref, b2_ref, w3_ref, b3_ref,
                     mu_ref):
    mu_ref[...] = _mu_from_obs(obs_ref, w1_ref, b1_ref, w2_ref, b2_ref,
                               w3_ref, b3_ref)


def _actor_mu_logp_kernel(obs_ref, act_ref, w1_ref, b1_ref, w2_ref, b2_ref,
                          w3_ref, b3_ref, inv_std_ref, cst_ref,
                          mu_ref, logp_ref):
    mu = _mu_from_obs(obs_ref, w1_ref, b1_ref, w2_ref, b2_ref, w3_ref, b3_ref)
    mu_ref[...] = mu
    # Normal(mu, exp(log_std)).log_prob(act).sum(-1); all f32 VPU math.
    z = (act_ref[...] - mu) * inv_std_ref[...]
    logp = -0.5 * (z * z) + cst_ref[...]
    logp_ref[...] = jnp.sum(logp, axis=-1, keepdims=True)


# ----------------------------- wrapper --------------------------------------


def prepare_actor_params(params):
    """One-time parameter preparation, hoisted out of the per-call path."""
    w1, b1, w2, b2, w3, b3, log_std = params
    return {
        "w1": w1.astype(jnp.bfloat16),
        "b1": b1.reshape(1, -1).astype(jnp.float32),
        "w2": w2.astype(jnp.bfloat16),
        "b2": b2.reshape(1, -1).astype(jnp.float32),
        "w3": w3.astype(jnp.float32),          # final matmul stays f32
        "b3": b3.reshape(1, -1).astype(jnp.float32),
        "inv_std": jnp.exp(-log_std).reshape(1, -1).astype(jnp.float32),
        "cst": (-log_std - _HALF_LOG_2PI).reshape(1, -1).astype(jnp.float32),
        "std": jnp.exp(log_std).astype(jnp.float32),
    }


def _batch_tile(B, block_b):
    """Batch tile: multiple of 8 (or the full batch), <= block_b, and giving
    >=2 grid steps whenever possible so both v7x TensorCores get work."""
    if B <= 8:
        return B
    tb = min(block_b, B)
    if tb >= B:                                 # one block would span the batch
        tb = pl.cdiv(pl.cdiv(B, 2), 8) * 8      # ~B/2, rounded up to mult of 8
    else:
        tb = max(8, (tb // 8) * 8)
    return min(tb, B)


def mlp_gaussian_actor_forward(obs, act, prepared, *, block_b=8192):
    """Returns (mu, std, logp_a); the Normal distribution is given by (mu, std).

    `prepared` is the dict from prepare_actor_params().  block_b is the max
    batch-tile: 8192 amortizes the ~0.35us per-grid-step overhead on v5e/v6e
    while the (lane-padded) VMEM footprint still fits v7x's 64 MiB VMEM.
    """
    obs = obs.astype(jnp.float32)
    B, obs_dim = obs.shape
    h1d = prepared["w1"].shape[1]
    h2d = prepared["w2"].shape[1]
    act_dim = prepared["w3"].shape[1]

    tb = _batch_tile(B, block_b)
    grid = (pl.cdiv(B, tb),)

    row_spec = lambda c: pl.BlockSpec((tb, c), lambda i: (i, 0))   # batch-tiled
    const_spec = lambda shape: pl.BlockSpec(shape, lambda i: (0, 0))  # resident

    weight_specs = [
        const_spec((obs_dim, h1d)),   # w1 (bf16, VMEM-resident)
        const_spec((1, h1d)),         # b1
        const_spec((h1d, h2d)),       # w2 (bf16, VMEM-resident)
        const_spec((1, h2d)),         # b2
        const_spec((h2d, act_dim)),   # w3 (f32, VMEM-resident)
        const_spec((1, act_dim)),     # b3
    ]
    weight_args = (prepared["w1"], prepared["b1"], prepared["w2"],
                   prepared["b2"], prepared["w3"], prepared["b3"])

    mlp_flops = 2 * B * (obs_dim * h1d + h1d * h2d + h2d * act_dim)
    weight_bytes = (2 * (obs_dim * h1d + h1d * h2d) + 4 * h2d * act_dim
                    + 4 * (h1d + h2d + 3 * act_dim))
    compiler_params = pltpu.CompilerParams(
        dimension_semantics=("parallel",),      # shard batch across v7x TCs
        vmem_limit_bytes=48 * 1024 * 1024,
    )

    if act is None:
        # Specialized path: no act input, no log-prob math.
        cost = pl.CostEstimate(
            flops=int(mlp_flops),
            transcendentals=int(B * (h1d + h2d)),
            bytes_accessed=int(4 * B * (obs_dim + act_dim) + weight_bytes),
        )
        mu = pl.pallas_call(
            _actor_mu_kernel,
            out_shape=jax.ShapeDtypeStruct((B, act_dim), jnp.float32),
            grid=grid,
            in_specs=[row_spec(obs_dim)] + weight_specs,
            out_specs=row_spec(act_dim),
            compiler_params=compiler_params,
            cost_estimate=cost,
        )(obs, *weight_args)
        return mu, prepared["std"], None

    act = act.astype(jnp.float32)
    cost = pl.CostEstimate(
        flops=int(mlp_flops + 6 * B * act_dim),
        transcendentals=int(B * (h1d + h2d)),
        bytes_accessed=int(4 * B * (obs_dim + 2 * act_dim + 1) + weight_bytes),
    )
    mu, logp = pl.pallas_call(
        _actor_mu_logp_kernel,
        out_shape=(jax.ShapeDtypeStruct((B, act_dim), jnp.float32),
                   jax.ShapeDtypeStruct((B, 1), jnp.float32)),
        grid=grid,
        in_specs=([row_spec(obs_dim), row_spec(act_dim)] + weight_specs
                  + [const_spec((1, act_dim)),     # inv_std = exp(-log_std)
                     const_spec((1, act_dim))]),   # -log_std - 0.5*log(2*pi)
        out_specs=(row_spec(act_dim), row_spec(1)),
        compiler_params=compiler_params,
        cost_estimate=cost,
    )(obs, act, *weight_args, prepared["inv_std"], prepared["cst"])
    return mu, prepared["std"], logp[:, 0]


# ----------------------------- init / reference -----------------------------


def init_params(key, obs_dim, hidden_sizes, act_dim):
    """Deterministic init mimicking nn.Linear default (U[-1/sqrt(in), 1/sqrt(in)]).
    Weights stored as (in, out) (transposed vs PyTorch)."""
    sizes = [obs_dim] + list(hidden_sizes) + [act_dim]
    params = []
    for j in range(len(sizes) - 1):
        fan_in, fan_out = sizes[j], sizes[j + 1]
        key, kw, kb = jax.random.split(key, 3)
        bound = 1.0 / (fan_in ** 0.5)
        w = jax.random.uniform(kw, (fan_in, fan_out), jnp.float32, -bound, bound)
        b = jax.random.uniform(kb, (fan_out,), jnp.float32, -bound, bound)
        params += [w, b]
    log_std = -0.5 * jnp.ones((act_dim,), dtype=jnp.float32)
    params.append(log_std)
    return tuple(params)


def _reference_forward(obs, act, params,
                       matmul_dtypes=(jnp.float32, jnp.float32, jnp.float32)):
    """Pure-JAX reference matching the PyTorch module semantics.  Per-layer
    matmul operand dtypes mirror the kernel's MXU numerics when needed."""
    w1, b1, w2, b2, w3, b3, log_std = params
    d1, d2, d3 = matmul_dtypes

    def dot(a, b, d):
        return jnp.dot(a.astype(d), b.astype(d),
                       preferred_element_type=jnp.float32)

    h1 = jnp.tanh(dot(obs, w1, d1) + b1)
    h2 = jnp.tanh(dot(h1, w2, d2) + b2)
    mu = dot(h2, w3, d3) + b3
    std = jnp.exp(log_std)
    z = (act - mu) * jnp.exp(-log_std)
    logp = (-0.5 * z * z - log_std - _HALF_LOG_2PI).sum(-1)
    return mu, std, logp


# ----------------------------- test -----------------------------------------


if __name__ == "__main__":
    B, obs_dim, act_dim = 256, 16, 8
    hidden_sizes = (32, 32)

    key = jax.random.PRNGKey(0)
    kp, ko, ka = jax.random.split(key, 3)

    params = init_params(kp, obs_dim, hidden_sizes, act_dim)
    obs = jax.random.normal(ko, (B, obs_dim), dtype=jnp.float32)
    act = jax.random.normal(ka, (B, act_dim), dtype=jnp.float32)

    # One-time parameter prep (bf16 casts, bias rows, inv_std/const rows, std).
    prepared = prepare_actor_params(params)

    # Default block_b splits B=256 into 2 grid steps (exercises batch tiling,
    # resident weights, and the v7x megacore path).
    mu, std, logp_a = mlp_gaussian_actor_forward(obs, act, prepared)
    jax.block_until_ready((mu, std, logp_a))
    assert mu.shape == (B, act_dim) and logp_a.shape == (B,)

    # Tight check vs a reference with identical numerics (bf16 operands for
    # layers 1-2, f32 final layer, f32 accumulation everywhere).
    mu_m, std_m, logp_m = _reference_forward(
        obs, act, params,
        matmul_dtypes=(jnp.bfloat16, jnp.bfloat16, jnp.float32))
    assert jnp.allclose(mu, mu_m, atol=2e-3, rtol=2e-3)
    assert jnp.allclose(logp_a, logp_m, atol=1e-2, rtol=1e-2)

    # Check vs the full-f32 reference (original PyTorch semantics); the final
    # layer now runs in f32 so mu / logp stay close.
    mu_f, std_f, logp_f = _reference_forward(obs, act, params)
    assert jnp.allclose(std, std_f, atol=1e-6, rtol=1e-6)
    assert jnp.allclose(mu, mu_f, atol=5e-2, rtol=5e-2)
    assert jnp.allclose(logp_a, logp_f, atol=2e-1, rtol=5e-2)

    # act=None path (forward(obs) in the PyTorch module): specialized mu-only
    # kernel, no act DMA, no log-prob math, logp_a is None.
    mu2, std2, logp2 = mlp_gaussian_actor_forward(obs, None, prepared)
    jax.block_until_ready((mu2, std2))
    assert logp2 is None
    assert jnp.allclose(mu2, mu, atol=1e-6, rtol=1e-6)

    # TODO(synk): torch.distributions.Normal object has no Pallas equivalent;
    # the distribution is represented by (mu, std).
    print("KERNEL_OK")
</pallas_src>

<mosaic_0001>
module attributes {stable_mosaic.version = 11 : i64} {
  func.func @_actor_mu_logp_kernel(%arg0: i32, %arg1: memref<128x16xf32, #tpu.memory_space<vmem>>, %arg2: memref<128x8xf32, #tpu.memory_space<vmem>>, %arg3: memref<16x32xbf16, #tpu.memory_space<vmem>>, %arg4: memref<1x32xf32, #tpu.memory_space<vmem>>, %arg5: memref<32x32xbf16, #tpu.memory_space<vmem>>, %arg6: memref<1x32xf32, #tpu.memory_space<vmem>>, %arg7: memref<32x8xf32, #tpu.memory_space<vmem>>, %arg8: memref<1x8xf32, #tpu.memory_space<vmem>>, %arg9: memref<1x8xf32, #tpu.memory_space<vmem>>, %arg10: memref<1x8xf32, #tpu.memory_space<vmem>>, %arg11: memref<128x8xf32, #tpu.memory_space<vmem>>, %arg12: memref<128x1xf32, #tpu.memory_space<vmem>>) attributes {dimension_semantics = [#tpu.dimension_semantics<parallel>], iteration_bounds = array<i64: 2>, scalar_prefetch = 0 : i64, scratch_operands = 0 : i64, tpu.core_type = #tpu.core_type<tc>, window_params = [{transform_indices = @transform_0, window_bounds = array<i64: 128, 16>}, {transform_indices = @transform_1, window_bounds = array<i64: 128, 8>}, {pipeline_mode = #tpu.pipeline_mode<synchronous>, transform_indices = @transform_2, window_bounds = array<i64: 16, 32>}, {pipeline_mode = #tpu.pipeline_mode<synchronous>, transform_indices = @transform_3, window_bounds = array<i64: 1, 32>}, {pipeline_mode = #tpu.pipeline_mode<synchronous>, transform_indices = @transform_4, window_bounds = array<i64: 32, 32>}, {pipeline_mode = #tpu.pipeline_mode<synchronous>, transform_indices = @transform_5, window_bounds = array<i64: 1, 32>}, {pipeline_mode = #tpu.pipeline_mode<synchronous>, transform_indices = @transform_6, window_bounds = array<i64: 32, 8>}, {pipeline_mode = #tpu.pipeline_mode<synchronous>, transform_indices = @transform_7, window_bounds = array<i64: 1, 8>}, {pipeline_mode = #tpu.pipeline_mode<synchronous>, transform_indices = @transform_8, window_bounds = array<i64: 1, 8>}, {pipeline_mode = #tpu.pipeline_mode<synchronous>, transform_indices = @transform_9, window_bounds = array<i64: 1, 8>}, {transform_indices = @transform_10, window_bounds = array<i64: 128, 8>}, {transform_indices = @transform_11, window_bounds = array<i64: 128, 1>}]} {
    %c0 = arith.constant 0 : index
    %c0_0 = arith.constant 0 : index
    %0 = vector.load %arg1[%c0, %c0_0] : memref<128x16xf32, #tpu.memory_space<vmem>>, vector<128x16xf32>
    %1 = arith.truncf %0 : vector<128x16xf32> to vector<128x16xbf16>
    %c0_1 = arith.constant 0 : index
    %c0_2 = arith.constant 0 : index
    %2 = vector.load %arg3[%c0_1, %c0_2] : memref<16x32xbf16, #tpu.memory_space<vmem>>, vector<16x32xbf16>
    %cst = arith.constant dense<0.000000e+00> : vector<128x32xf32>
    %3 = tpu.matmul %1, %2, %cst {dimension_numbers = #tpu.dot_dimension_numbers<[1], [0], [0], [1], [0, 0, 1, 1], [], []>} : vector<128x16xbf16>, vector<16x32xbf16>, vector<128x32xf32> -> vector<128x32xf32>
    %c0_3 = arith.constant 0 : index
    %c0_4 = arith.constant 0 : index
    %4 = vector.load %arg4[%c0_3, %c0_4] : memref<1x32xf32, #tpu.memory_space<vmem>>, vector<1x32xf32>
    %5 = vector.broadcast %4 : vector<1x32xf32> to vector<128x32xf32>
    %6 = arith.addf %3, %5 : vector<128x32xf32>
    %7 = math.tanh %6 : vector<128x32xf32>
    %8 = arith.truncf %7 : vector<128x32xf32> to vector<128x32xbf16>
    %c0_5 = arith.constant 0 : index
    %c0_6 = arith.constant 0 : index
    %9 = vector.load %arg5[%c0_5, %c0_6] : memref<32x32xbf16, #tpu.memory_space<vmem>>, vector<32x32xbf16>
    %cst_7 = arith.constant dense<0.000000e+00> : vector<128x32xf32>
    %10 = tpu.matmul %8, %9, %cst_7 {dimension_numbers = #tpu.dot_dimension_numbers<[1], [0], [0], [1], [0, 0, 1, 1], [], []>} : vector<128x32xbf16>, vector<32x32xbf16>, vector<128x32xf32> -> vector<128x32xf32>
    %c0_8 = arith.constant 0 : index
    %c0_9 = arith.constant 0 : index
    %11 = vector.load %arg6[%c0_8, %c0_9] : memref<1x32xf32, #tpu.memory_space<vmem>>, vector<1x32xf32>
    %12 = vector.broadcast %11 : vector<1x32xf32> to vector<128x32xf32>
    %13 = arith.addf %10, %12 : vector<128x32xf32>
    %14 = math.tanh %13 : vector<128x32xf32>
    %c0_10 = arith.constant 0 : index
    %c0_11 = arith.constant 0 : index
    %15 = vector.load %arg7[%c0_10, %c0_11] : memref<32x8xf32, #tpu.memory_space<vmem>>, vector<32x8xf32>
    %cst_12 = arith.constant dense<0.000000e+00> : vector<128x8xf32>
    %16 = tpu.matmul %14, %15, %cst_12 {dimension_numbers = #tpu.dot_dimension_numbers<[1], [0], [0], [1], [0, 0, 1, 1], [], []>} : vector<128x32xf32>, vector<32x8xf32>, vector<128x8xf32> -> vector<128x8xf32>
    %c0_13 = arith.constant 0 : index
    %c0_14 = arith.constant 0 : index
    %17 = vector.load %arg8[%c0_13, %c0_14] : memref<1x8xf32, #tpu.memory_space<vmem>>, vector<1x8xf32>
    %18 = vector.broadcast %17 : vector<1x8xf32> to vector<128x8xf32>
    %19 = arith.addf %16, %18 : vector<128x8xf32>
    %c0_15 = arith.constant 0 : index
    %c0_16 = arith.constant 0 : index
    %20 = vector.load %arg11[%c0_15, %c0_16] : memref<128x8xf32, #tpu.memory_space<vmem>>, vector<128x8xf32>
    tpu.vector_store %arg11[%c0_15, %c0_16], %19 {strides = array<i32>} : memref<128x8xf32, #tpu.memory_space<vmem>>, vector<128x8xf32>,
    %c0_17 = arith.constant 0 : index
    %c0_18 = arith.constant 0 : index
    %21 = vector.load %arg2[%c0_17, %c0_18] : memref<128x8xf32, #tpu.memory_space<vmem>>, vector<128x8xf32>
    %22 = arith.subf %21, %19 : vector<128x8xf32>
    %c0_19 = arith.constant 0 : index
    %c0_20 = arith.constant 0 : index
    %23 = vector.load %arg9[%c0_19, %c0_20] : memref<1x8xf32, #tpu.memory_space<vmem>>, vector<1x8xf32>
    %24 = vector.broadcast %23 : vector<1x8xf32> to vector<128x8xf32>
    %25 = arith.mulf %22, %24 : vector<128x8xf32>
    %26 = arith.mulf %25, %25 : vector<128x8xf32>
    %cst_21 = arith.constant -5.000000e-01 : f32
    %27 = vector.broadcast %cst_21 : f32 to vector<128x8xf32>
    %28 = arith.mulf %27, %26 : vector<128x8xf32>
    %c0_22 = arith.constant 0 : index
    %c0_23 = arith.constant 0 : index
    %29 = vector.load %arg10[%c0_22, %c0_23] : memref<1x8xf32, #tpu.memory_space<vmem>>, vector<1x8xf32>
    %30 = vector.broadcast %29 : vector<1x8xf32> to vector<128x8xf32>
    %31 = arith.addf %28, %30 : vector<128x8xf32>
    %cst_24 = arith.constant dense<0.000000e+00> : vector<128xf32>
    %32 = vector.multi_reduction <add>, %31, %cst_24 [1] : vector<128x8xf32> to vector<128xf32>
    %33 = vector.shape_cast %32 : vector<128xf32> to vector<128x1xf32>
    %c0_25 = arith.constant 0 : index
    %c0_26 = arith.constant 0 : index
    %34 = vector.load %arg12[%c0_25, %c0_26] : memref<128x1xf32, #tpu.memory_space<vmem>>, vector<128x1xf32>
    tpu.vector_store %arg12[%c0_25, %c0_26], %33 {strides = array<i32>} : memref<128x1xf32, #tpu.memory_space<vmem>>, vector<128x1xf32>,
    return
  }
  func.func @transform_0(%arg0: i32) -> (i32, i32) {
    %c0_i32 = arith.constant 0 : i32
    %c0_i32_0 = arith.constant 0 : i32
    return %arg0, %c0_i32 : i32, i32
  }
  func.func @transform_1(%arg0: i32) -> (i32, i32) {
    %c0_i32 = arith.constant 0 : i32
    %c0_i32_0 = arith.constant 0 : i32
    return %arg0, %c0_i32 : i32, i32
  }
  func.func @transform_2(%arg0: i32) -> (i32, i32) {
    %c0_i32 = arith.constant 0 : i32
    %c0_i32_0 = arith.constant 0 : i32
    %c0_i32_1 = arith.constant 0 : i32
    return %c0_i32, %c0_i32_0 : i32, i32
  }
  func.func @transform_3(%arg0: i32) -> (i32, i32) {
    %c0_i32 = arith.constant 0 : i32
    %c0_i32_0 = arith.constant 0 : i32
    %c0_i32_1 = arith.constant 0 : i32
    return %c0_i32, %c0_i32_0 : i32, i32
  }
  func.func @transform_4(%arg0: i32) -> (i32, i32) {
    %c0_i32 = arith.constant 0 : i32
    %c0_i32_0 = arith.constant 0 : i32
    %c0_i32_1 = arith.constant 0 : i32
    return %c0_i32, %c0_i32_0 : i32, i32
  }
  func.func @transform_5(%arg0: i32) -> (i32, i32) {
    %c0_i32 = arith.constant 0 : i32
    %c0_i32_0 = arith.constant 0 : i32
    %c0_i32_1 = arith.constant 0 : i32
    return %c0_i32, %c0_i32_0 : i32, i32
  }
  func.func @transform_6(%arg0: i32) -> (i32, i32) {
    %c0_i32 = arith.constant 0 : i32
    %c0_i32_0 = arith.constant 0 : i32
    %c0_i32_1 = arith.constant 0 : i32
    return %c0_i32, %c0_i32_0 : i32, i32
  }
  func.func @transform_7(%arg0: i32) -> (i32, i32) {
    %c0_i32 = arith.constant 0 : i32
    %c0_i32_0 = arith.constant 0 : i32
    %c0_i32_1 = arith.constant 0 : i32
    return %c0_i32, %c0_i32_0 : i32, i32
  }
  func.func @transform_8(%arg0: i32) -> (i32, i32) {
    %c0_i32 = arith.constant 0 : i32
    %c0_i32_0 = arith.constant 0 : i32
    %c0_i32_1 = arith.constant 0 : i32
    return %c0_i32, %c0_i32_0 : i32, i32
  }
  func.func @transform_9(%arg0: i32) -> (i32, i32) {
    %c0_i32 = arith.constant 0 : i32
    %c0_i32_0 = arith.constant 0 : i32
    %c0_i32_1 = arith.constant 0 : i32
    return %c0_i32, %c0_i32_0 : i32, i32
  }
  func.func @transform_10(%arg0: i32) -> (i32, i32) {
    %c0_i32 = arith.constant 0 : i32
    %c0_i32_0 = arith.constant 0 : i32
    return %arg0, %c0_i32 : i32, i32
  }
  func.func @transform_11(%arg0: i32) -> (i32, i32) {
    %c0_i32 = arith.constant 0 : i32
    %c0_i32_0 = arith.constant 0 : i32
    return %arg0, %c0_i32 : i32, i32
  }
}

</mosaic_0001>

<llo_original>
// kernel: tpu_custom_call.1
$region0: #{tpu_custom_call.1}
  #allocation0 [shape = 'u32[]', space=smem, size = 0x4, offset = 0x4, fixed_abs, tag = 'smem constant byte address 0x4 - core index']
  #allocation1 [shape = 'u32[144,128]{1,0:T(1,128)}', space=vmem, size = 0x12000, scoped, tag = 'internal scratch']
  %s0 = inlined_call_operand.vmem [shape: f32[256,16], index: 0, kind: input, shape index: {}]
  %s1 = inlined_call_operand.vmem [shape: f32[256,8], index: 1, kind: input, shape index: {}]
  %s2 = inlined_call_operand.vmem [shape: bf16[16,32], index: 2, kind: input, shape index: {}]
  %s3 = inlined_call_operand.vmem [shape: f32[1,32], index: 3, kind: input, shape index: {}]
  %s4 = inlined_call_operand.vmem [shape: bf16[32,32], index: 4, kind: input, shape index: {}]
  %s5 = inlined_call_operand.vmem [shape: f32[1,32], index: 5, kind: input, shape index: {}]
  %s6 = inlined_call_operand.vmem [shape: f32[32,8], index: 6, kind: input, shape index: {}]
  %s7 = inlined_call_operand.vmem [shape: f32[1,8], index: 7, kind: input, shape index: {}]
  %s8 = inlined_call_operand.vmem [shape: f32[1,8], index: 8, kind: input, shape index: {}]
  %s9 = inlined_call_operand.vmem [shape: f32[1,8], index: 9, kind: input, shape index: {}]
  %s10 = inlined_call_operand.vmem [shape: f32[256,8], index: 10, kind: output, shape index: {0}]
  %s11 = inlined_call_operand.vmem [shape: f32[256,1], index: 11, kind: output, shape index: {1}]
  %12 = xla_tuple %s10, %s11
  %s13 = sld [smem:[#allocation0]]
  $region81: #{tpu_custom_call.1} parent=0
    _
  %s15 = ssub.s32 1, %s13
  %s16 = scalar_select 0, %s15, %s13
  loop: start=0, step=1, limit=4
  $region2: #{tpu_custom_call.1} parent=0 // loop_pre_header
    _
  $region3: #{tpu_custom_call.1} parent=0 // loop_header
    %s18 = sphi 0, %s22
    %p19 = scmp.ge.s32.totalorder %s18, 4
    %s28 = sphi 0, %s30
    %s31 = sphi 0, %s28
    %s32 = sphi 0, %s31
    %s48 = sphi 0, %s32
    %s54 = sphi 0, %s56
    %s57 = sphi 0, %s54
    %s58 = sphi 0, %s57
    %s74 = sphi 0, %s58
    %s78 = sphi 0, %s78
    %s80 = sphi 0, %s78
    %s81 = sphi 0, %s80
    %s95 = sphi 0, %s81
    %s99 = sphi 0, %s99
    %s101 = sphi 0, %s99
    %s102 = sphi 0, %s101
    %s116 = sphi 0, %s102
    %s120 = sphi 0, %s120
    %s122 = sphi 0, %s120
    %s123 = sphi 0, %s122
    %s137 = sphi 0, %s123
    %s141 = sphi 0, %s141
    %s143 = sphi 0, %s141
    %s144 = sphi 0, %s143
    %s158 = sphi 0, %s144
    %s162 = sphi 0, %s162
    %s164 = sphi 0, %s162
    %s165 = sphi 0, %s164
    %s179 = sphi 0, %s165
    %s183 = sphi 0, %s183
    %s185 = sphi 0, %s183
    %s186 = sphi 0, %s185
    %s200 = sphi 0, %s186
    %s204 = sphi 0, %s204
    %s206 = sphi 0, %s204
    %s207 = sphi 0, %s206
    %s221 = sphi 0, %s207
    %s225 = sphi 0, %s225
    %s227 = sphi 0, %s225
    %s228 = sphi 0, %s227
    %s242 = sphi 0, %s228
    %s248 = sphi 0, %s250
    %s251 = sphi 0, %s248
    %s252 = sphi 0, %s251
    %s268 = sphi 0, %s252
    %s274 = sphi 0, %s276
    %s277 = sphi 0, %s274
    %s278 = sphi 0, %s277
    %s294 = sphi 0, %s278
  $region4: #{tpu_custom_call.1} parent=0 // loop_header_branch
    %21 = sbr.rel (%p19) target = $region8
  $region5: #{tpu_custom_call.1} parent=0 // loop_body
    %s23 = ssub.s32 %s18, 1
    %s24 = ssub.s32 %s18, 2
    %s25 = sadd.s32 %s18, 1
    %s26 = ssub.s32 %s18, %s25
    %p27 = scmp.eq.s32.totalorder %s26, 0
    %s29 = sadd.s32 %s28, 1
    %s30 = scalar_select %p27, %s28, %s29
    %p33 = pneg %p27
    %p34 = scmp.eq.s32.totalorder %s18, 1
    %p35 = por %p33, %p34
    %p36 = scmp.ne.s32.totalorder %s28, %s31
    %p37 = scmp.eq.s32.totalorder %s18, 0
    %p38 = por %p36, %p37
    %p39 = scmp.ne.s32.totalorder %s28, %s31
    %p40 = scmp.eq.s32.totalorder %s23, 1
    %p41 = por %p39, %p40
    %p42 = scmp.ne.s32.totalorder %s31, %s32
    %p43 = scmp.eq.s32.totalorder %s23, 0
    %p44 = por %p42, %p43
    %p45 = scmp.ne.s32.totalorder %s31, %s32
    %p46 = scmp.eq.s32.totalorder %s24, 1
    %p47 = por %p45, %p46
    %p49 = scmp.ne.s32.totalorder %s32, %s48
    %p50 = scmp.eq.s32.totalorder %s24, 0
    %p51 = por %p49, %p50
    %s52 = ssub.s32 %s18, %s25
    %p53 = scmp.eq.s32.totalorder %s52, 0
    %s55 = sadd.s32 %s54, 1
    %s56 = scalar_select %p53, %s54, %s55
    %p59 = pneg %p53
    %p60 = scmp.eq.s32.totalorder %s18, 1
    %p61 = por %p59, %p60
    %p62 = scmp.ne.s32.totalorder %s54, %s57
    %p63 = scmp.eq.s32.totalorder %s18, 0
    %p64 = por %p62, %p63
    %p65 = scmp.ne.s32.totalorder %s54, %s57
    %p66 = scmp.eq.s32.totalorder %s23, 1
    %p67 = por %p65, %p66
    %p68 = scmp.ne.s32.totalorder %s57, %s58
    %p69 = scmp.eq.s32.totalorder %s23, 0
    %p70 = por %p68, %p69
    %p71 = scmp.ne.s32.totalorder %s57, %s58
    %p72 = scmp.eq.s32.totalorder %s24, 1
    %p73 = por %p71, %p72
    %p75 = scmp.ne.s32.totalorder %s58, %s74
    %p76 = scmp.eq.s32.totalorder %s24, 0
    %p77 = por %p75, %p76
    %s79 = sadd.s32 %s78, 1
    %p82 = scmp.eq.s32.totalorder %s18, 1
    %p83 = scmp.ne.s32.totalorder %s78, %s80
    %p84 = scmp.eq.s32.totalorder %s18, 0
    %p85 = por %p83, %p84
    %p86 = scmp.ne.s32.totalorder %s78, %s80
    %p87 = scmp.eq.s32.totalorder %s23, 1
    %p88 = por %p86, %p87
    %p89 = scmp.ne.s32.totalorder %s80, %s81
    %p90 = scmp.eq.s32.totalorder %s23, 0
    %p91 = por %p89, %p90
    %p92 = scmp.ne.s32.totalorder %s80, %s81
    %p93 = scmp.eq.s32.totalorder %s24, 1
    %p94 = por %p92, %p93
    %p96 = scmp.ne.s32.totalorder %s81, %s95
    %p97 = scmp.eq.s32.totalorder %s24, 0
    %p98 = por %p96, %p97
    %s100 = sadd.s32 %s99, 1
    %p103 = scmp.eq.s32.totalorder %s18, 1
    %p104 = scmp.ne.s32.totalorder %s99, %s101
    %p105 = scmp.eq.s32.totalorder %s18, 0
    %p106 = por %p104, %p105
    %p107 = scmp.ne.s32.totalorder %s99, %s101
    %p108 = scmp.eq.s32.totalorder %s23, 1
    %p109 = por %p107, %p108
    %p110 = scmp.ne.s32.totalorder %s101, %s102
    %p111 = scmp.eq.s32.totalorder %s23, 0
    %p112 = por %p110, %p111
    %p113 = scmp.ne.s32.totalorder %s101, %s102
    %p114 = scmp.eq.s32.totalorder %s24, 1
    %p115 = por %p113, %p114
    %p117 = scmp.ne.s32.totalorder %s102, %s116
    %p118 = scmp.eq.s32.totalorder %s24, 0
    %p119 = por %p117, %p118
    %s121 = sadd.s32 %s120, 1
    %p124 = scmp.eq.s32.totalorder %s18, 1
    %p125 = scmp.ne.s32.totalorder %s120, %s122
    %p126 = scmp.eq.s32.totalorder %s18, 0
    %p127 = por %p125, %p126
    %p128 = scmp.ne.s32.totalorder %s120, %s122
    %p129 = scmp.eq.s32.totalorder %s23, 1
    %p130 = por %p128, %p129
    %p131 = scmp.ne.s32.totalorder %s122, %s123
    %p132 = scmp.eq.s32.totalorder %s23, 0
    %p133 = por %p131, %p132
    %p134 = scmp.ne.s32.totalorder %s122, %s123
    %p135 = scmp.eq.s32.totalorder %s24, 1
    %p136 = por %p134, %p135
    %p138 = scmp.ne.s32.totalorder %s123, %s137
    %p139 = scmp.eq.s32.totalorder %s24, 0
    %p140 = por %p138, %p139
    %s142 = sadd.s32 %s141, 1
    %p145 = scmp.eq.s32.totalorder %s18, 1
    %p146 = scmp.ne.s32.totalorder %s141, %s143
    %p147 = scmp.eq.s32.totalorder %s18, 0
    %p148 = por %p146, %p147
    %p149 = scmp.ne.s32.totalorder %s141, %s143
    %p150 = scmp.eq.s32.totalorder %s23, 1
    %p151 = por %p149, %p150
    %p152 = scmp.ne.s32.totalorder %s143, %s144
    %p153 = scmp.eq.s32.totalorder %s23, 0
    %p154 = por %p152, %p153
    %p155 = scmp.ne.s32.totalorder %s143, %s144
    %p156 = scmp.eq.s32.totalorder %s24, 1
    %p157 = por %p155, %p156
    %p159 = scmp.ne.s32.totalorder %s144, %s158
    %p160 = scmp.eq.s32.totalorder %s24, 0
    %p161 = por %p159, %p160
    %s163 = sadd.s32 %s162, 1
    %p166 = scmp.eq.s32.totalorder %s18, 1
    %p167 = scmp.ne.s32.totalorder %s162, %s164
    %p168 = scmp.eq.s32.totalorder %s18, 0
    %p169 = por %p167, %p168
    %p170 = scmp.ne.s32.totalorder %s162, %s164
    %p171 = scmp.eq.s32.totalorder %s23, 1
    %p172 = por %p170, %p171
    %p173 = scmp.ne.s32.totalorder %s164, %s165
    %p174 = scmp.eq.s32.totalorder %s23, 0
    %p175 = por %p173, %p174
    %p176 = scmp.ne.s32.totalorder %s164, %s165
    %p177 = scmp.eq.s32.totalorder %s24, 1
    %p178 = por %p176, %p177
    %p180 = scmp.ne.s32.totalorder %s165, %s179
    %p181 = scmp.eq.s32.totalorder %s24, 0
    %p182 = por %p180, %p181
    %s184 = sadd.s32 %s183, 1
    %p187 = scmp.eq.s32.totalorder %s18, 1
    %p188 = scmp.ne.s32.totalorder %s183, %s185
    %p189 = scmp.eq.s32.totalorder %s18, 0
    %p190 = por %p188, %p189
    %p191 = scmp.ne.s32.totalorder %s183, %s185
    %p192 = scmp.eq.s32.totalorder %s23, 1
    %p193 = por %p191, %p192
    %p194 = scmp.ne.s32.totalorder %s185, %s186
    %p195 = scmp.eq.s32.totalorder %s23, 0
    %p196 = por %p194, %p195
    %p197 = scmp.ne.s32.totalorder %s185, %s186
    %p198 = scmp.eq.s32.totalorder %s24, 1
    %p199 = por %p197, %p198
    %p201 = scmp.ne.s32.totalorder %s186, %s200
    %p202 = scmp.eq.s32.totalorder %s24, 0
    %p203 = por %p201, %p202
    %s205 = sadd.s32 %s204, 1
    %p208 = scmp.eq.s32.totalorder %s18, 1
    %p209 = scmp.ne.s32.totalorder %s204, %s206
    %p210 = scmp.eq.s32.totalorder %s18, 0
    %p211 = por %p209, %p210
    %p212 = scmp.ne.s32.totalorder %s204, %s206
    %p213 = scmp.eq.s32.totalorder %s23, 1
    %p214 = por %p212, %p213
    %p215 = scmp.ne.s32.totalorder %s206, %s207
    %p216 = scmp.eq.s32.totalorder %s23, 0
    %p217 = por %p215, %p216
    %p218 = scmp.ne.s32.totalorder %s206, %s207
    %p219 = scmp.eq.s32.totalorder %s24, 1
    %p220 = por %p218, %p219
    %p222 = scmp.ne.s32.totalorder %s207, %s221
    %p223 = scmp.eq.s32.totalorder %s24, 0
    %p224 = por %p222, %p223
    %s226 = sadd.s32 %s225, 1
    %p229 = scmp.eq.s32.totalorder %s18, 1
    %p230 = scmp.ne.s32.totalorder %s225, %s227
    %p231 = scmp.eq.s32.totalorder %s18, 0
    %p232 = por %p230, %p231
    %p233 = scmp.ne.s32.totalorder %s225, %s227
    %p234 = scmp.eq.s32.totalorder %s23, 1
    %p235 = por %p233, %p234
    %p236 = scmp.ne.s32.totalorder %s227, %s228
    %p237 = scmp.eq.s32.totalorder %s23, 0
    %p238 = por %p236, %p237
    %p239 = scmp.ne.s32.totalorder %s227, %s228
    %p240 = scmp.eq.s32.totalorder %s24, 1
    %p241 = por %p239, %p240
    %p243 = scmp.ne.s32.totalorder %s228, %s242
    %p244 = scmp.eq.s32.totalorder %s24, 0
    %p245 = por %p243, %p244
    %s246 = ssub.s32 %s18, %s25
    %p247 = scmp.eq.s32.totalorder %s246, 0
    %s249 = sadd.s32 %s248, 1
    %s250 = scalar_select %p247, %s248, %s249
    %p253 = pneg %p247
    %p254 = scmp.eq.s32.totalorder %s18, 1
    %p255 = por %p253, %p254
    %p256 = scmp.ne.s32.totalorder %s248, %s251
    %p257 = scmp.eq.s32.totalorder %s18, 0
    %p258 = por %p256, %p257
    %p259 = scmp.ne.s32.totalorder %s248, %s251
    %p260 = scmp.eq.s32.totalorder %s23, 1
    %p261 = por %p259, %p260
    %p262 = scmp.ne.s32.totalorder %s251, %s252
    %p263 = scmp.eq.s32.totalorder %s23, 0
    %p264 = por %p262, %p263
    %p265 = scmp.ne.s32.totalorder %s251, %s252
    %p266 = scmp.eq.s32.totalorder %s24, 1
    %p267 = por %p265, %p266
    %p269 = scmp.ne.s32.totalorder %s252, %s268
    %p270 = scmp.eq.s32.totalorder %s24, 0
    %p271 = por %p269, %p270
    %s272 = ssub.s32 %s18, %s25
    %p273 = scmp.eq.s32.totalorder %s272, 0
    %s275 = sadd.s32 %s274, 1
    %s276 = scalar_select %p273, %s274, %s275
    %p279 = pneg %p273
    %p280 = scmp.eq.s32.totalorder %s18, 1
    %p281 = por %p279, %p280
    %p282 = scmp.ne.s32.totalorder %s274, %s277
    %p283 = scmp.eq.s32.totalorder %s18, 0
    %p284 = por %p282, %p283
    %p285 = scmp.ne.s32.totalorder %s274, %s277
    %p286 = scmp.eq.s32.totalorder %s23, 1
    %p287 = por %p285, %p286
    %p288 = scmp.ne.s32.totalorder %s277, %s278
    %p289 = scmp.eq.s32.totalorder %s23, 0
    %p290 = por %p288, %p289
    %p291 = scmp.ne.s32.totalorder %s277, %s278
    %p292 = scmp.eq.s32.totalorder %s24, 1
    %p293 = por %p291, %p292
    %p295 = scmp.ne.s32.totalorder %s278, %s294
    %p296 = scmp.eq.s32.totalorder %s24, 0
    %p297 = por %p295, %p296
    %p298 = scmp.le.s32.totalorder 1, %s18
    %p299 = scmp.lt.s32.totalorder %s18, 3
    %p300 = pnand %p298, %p299
    %p301 = pneg %p300
    // Predicated region
    $region9: #{tpu_custom_call.1} parent=5 // pred_check
      _
    $region10: #{tpu_custom_call.1} parent=5 // pred_check_branch
      %303 = sbr.rel (%p300) target = $region12
    $region11: #{tpu_custom_call.1} parent=5 // pred_region
      %s304 = ssub.s32 %s18, 1
      // Predicated region
      $region13: #{tpu_custom_call.1} parent=11 // pred_check
        %p305 = pneg %p91
      $region14: #{tpu_custom_call.1} parent=11 // pred_check_branch
        %307 = sbr.rel (%p305) target = $region16
      $region15: #{tpu_custom_call.1} parent=11 // pred_region
        _
      $region16: #{tpu_custom_call.1} parent=11 // pred_fallthru
        _
      // Predicated region
      $region17: #{tpu_custom_call.1} parent=11 // pred_check
        %p308 = pneg %p112
      $region18: #{tpu_custom_call.1} parent=11 // pred_check_branch
        %310 = sbr.rel (%p308) target = $region20
      $region19: #{tpu_custom_call.1} parent=11 // pred_region
        _
      $region20: #{tpu_custom_call.1} parent=11 // pred_fallthru
        _
      // Predicated region
      $region21: #{tpu_custom_call.1} parent=11 // pred_check
        %p311 = pneg %p133
      $region22: #{tpu_custom_call.1} parent=11 // pred_check_branch
        %313 = sbr.rel (%p311) target = $region24
      $region23: #{tpu_custom_call.1} parent=11 // pred_region
        _
      $region24: #{tpu_custom_call.1} parent=11 // pred_fallthru
        _
      // Predicated region
      $region25: #{tpu_custom_call.1} parent=11 // pred_check
        %p314 = pneg %p154
      $region26: #{tpu_custom_call.1} parent=11 // pred_check_branch
        %316 = sbr.rel (%p314) target = $region28
      $region27: #{tpu_custom_call.1} parent=11 // pred_region
        _
      $region28: #{tpu_custom_call.1} parent=11 // pred_fallthru
        _
      // Predicated region
      $region29: #{tpu_custom_call.1} parent=11 // pred_check
        %p317 = pneg %p175
      $region30: #{tpu_custom_call.1} parent=11 // pred_check_branch
        %319 = sbr.rel (%p317) target = $region32
      $region31: #{tpu_custom_call.1} parent=11 // pred_region
        _
      $region32: #{tpu_custom_call.1} parent=11 // pred_fallthru
        _
      // Predicated region
      $region33: #{tpu_custom_call.1} parent=11 // pred_check
        %p320 = pneg %p196
      $region34: #{tpu_custom_call.1} parent=11 // pred_check_branch
        %322 = sbr.rel (%p320) target = $region36
      $region35: #{tpu_custom_call.1} parent=11 // pred_region
        _
      $region36: #{tpu_custom_call.1} parent=11 // pred_fallthru
        _
      // Predicated region
      $region37: #{tpu_custom_call.1} parent=11 // pred_check
        %p323 = pneg %p217
      $region38: #{tpu_custom_call.1} parent=11 // pred_check_branch
        %325 = sbr.rel (%p323) target = $region40
      $region39: #{tpu_custom_call.1} parent=11 // pred_region
        _
      $region40: #{tpu_custom_call.1} parent=11 // pred_fallthru
        _
      // Predicated region
      $region41: #{tpu_custom_call.1} parent=11 // pred_check
        %p326 = pneg %p238
      $region42: #{tpu_custom_call.1} parent=11 // pred_check_branch
        %328 = sbr.rel (%p326) target = $region44
      $region43: #{tpu_custom_call.1} parent=11 // pred_region
        _
      $region44: #{tpu_custom_call.1} parent=11 // pred_fallthru
        _
    $region12: #{tpu_custom_call.1} parent=5 // pred_fallthru
      _
    %p329 = scmp.lt.s32.totalorder %s18, 2
    // Predicated region
    $region45: #{tpu_custom_call.1} parent=5 // pred_check
      %p330 = pneg %p329
    $region46: #{tpu_custom_call.1} parent=5 // pred_check_branch
      %332 = sbr.rel (%p330) target = $region48
    $region47: #{tpu_custom_call.1} parent=5 // pred_region
      // Predicated region
      $region49: #{tpu_custom_call.1} parent=47 // pred_check
        %p333 = pneg %p38
      $region50: #{tpu_custom_call.1} parent=47 // pred_check_branch
        %335 = sbr.rel (%p333) target = $region52
      $region51: #{tpu_custom_call.1} parent=47 // pred_region
        %s336 = smul.u32 16, %s18
        %p337 = scmp.lt.s32.totalorder %s336, 31
        %s338 = scalar_select %p337, %s336, 31
        %s339 = smul.addr %s338, 8
        %s340 = scalar_lea.vmem %s0, %s339
        %s341 = smul.u32 16, %s18
      $region52: #{tpu_custom_call.1} parent=47 // pred_fallthru
        _
      // Predicated region
      $region53: #{tpu_custom_call.1} parent=47 // pred_check
        %p342 = pneg %p64
      $region54: #{tpu_custom_call.1} parent=47 // pred_check_branch
        %344 = sbr.rel (%p342) target = $region56
      $region55: #{tpu_custom_call.1} parent=47 // pred_region
        %s345 = smul.u32 16, %s18
        %p346 = scmp.lt.s32.totalorder %s345, 31
        %s347 = scalar_select %p346, %s345, 31
        %s348 = smul.addr %s347, 8
        %s349 = scalar_lea.vmem %s1, %s348
        %s350 = smul.u32 16, %s18
      $region56: #{tpu_custom_call.1} parent=47 // pred_fallthru
        _
    $region48: #{tpu_custom_call.1} parent=5 // pred_fallthru
      _
    %p351 = scmp.le.s32.totalorder 1, %s18
    %p352 = scmp.lt.s32.totalorder %s18, 3
    %p353 = pnand %p351, %p352
    %p354 = pneg %p353
    // Predicated region
    $region57: #{tpu_custom_call.1} parent=5 // pred_check
      _
    $region58: #{tpu_custom_call.1} parent=5 // pred_check_branch
      %356 = sbr.rel (%p353) target = $region60
    $region59: #{tpu_custom_call.1} parent=5 // pred_region
      %s357 = ssub.s32 %s18, 1
      %s358 = smul.u32 16, %s23
      %p359 = scmp.lt.s32.totalorder %s358, 31
      %s360 = scalar_select %p359, %s358, 31
      %s361 = smul.addr %s360, 8
      %s362 = scalar_lea.vmem %s0, %s361
      %p363 = pneg %p44
      %p364 = pneg %p41
      %s365 = smul.u32 16, %s23
      %p366 = scmp.lt.s32.totalorder %s365, 31
      %s367 = scalar_select %p366, %s365, 31
      %s368 = smul.addr %s367, 8
      %s369 = scalar_lea.vmem %s1, %s368
      %p370 = pneg %p70
      %p371 = pneg %p67
      %p372 = pneg %p91
      %p373 = pneg %p88
      %p374 = pneg %p112
      %p375 = pneg %p109
      %p376 = pneg %p133
      %p377 = pneg %p130
      %p378 = pneg %p154
      %p379 = pneg %p151
      %p380 = pneg %p175
      %p381 = pneg %p172
      %p382 = pneg %p196
      %p383 = pneg %p193
      %p384 = pneg %p217
      %p385 = pneg %p214
      %p386 = pneg %p238
      %p387 = pneg %p235
      %p388 = pneg %p264
      %p389 = pneg %p261
      %s390 = smul.u32 16, %s23
      %p391 = scmp.lt.s32.totalorder %s390, 31
      %s392 = scalar_select %p391, %s390, 31
      %s393 = smul.addr %s392, 8
      %s394 = scalar_lea.vmem %s10, %s393
      %p395 = pneg %p290
      %p396 = pneg %p287
      %s397 = smul.u32 16, %s23
      %p398 = scmp.lt.s32.totalorder %s397, 31
      %s399 = scalar_select %p398, %s397, 31
      %s400 = smul.addr %s399, 8
      %s401 = scalar_lea.vmem %s11, %s400
      %s402 = smul.u32 16, %s23
      %p403 = scmp.lt.s32.totalorder %s402, 31
      %s404 = scalar_select %p403, %s402, 31
      %s405 = smul.addr %s404, 8
      %s406 = scalar_lea.vmem %s0, %s405
      %s407 = smul.u32 16, %s23
      %s408 = smul.u32 16, %s23
      %p409 = scmp.lt.s32.totalorder %s408, 31
      %s410 = scalar_select %p409, %s408, 31
      %s411 = smul.addr %s410, 8
      %s412 = scalar_lea.vmem %s1, %s411
      %s413 = smul.u32 16, %s23
      %s414 = smul.u32 16, %s23
      %p415 = scmp.lt.s32.totalorder %s414, 31
      %s416 = scalar_select %p415, %s414, 31
      %s417 = smul.addr %s416, 8
      %s418 = scalar_lea.vmem %s10, %s417
      %s419 = smul.u32 16, %s23
      %s420 = smul.u32 16, %s23
      %p421 = scmp.lt.s32.totalorder %s420, 31
      %s422 = scalar_select %p421, %s420, 31
      %s423 = smul.addr %s422, 8
      %s424 = scalar_lea.vmem %s11, %s423
      %s425 = smul.u32 16, %s23
      %v427 = vld [vmem:[%s406] sm:$0xff]
      %v428 = vld [vmem:[%s406 + $0x8] sm:$0xff]
      %v429 = vld [vmem:[%s406 + $0x10] sm:$0xff]
      %v430 = vld [vmem:[%s406 + $0x18] sm:$0xff]
      %v431 = vld [vmem:[%s406 + $0x20] sm:$0xff]
      %v432 = vld [vmem:[%s406 + $0x28] sm:$0xff]
      %v433 = vld [vmem:[%s406 + $0x30] sm:$0xff]
      %v434 = vld [vmem:[%s406 + $0x38] sm:$0xff]
      %v435 = vld [vmem:[%s406 + $0x40] sm:$0xff]
      %v436 = vld [vmem:[%s406 + $0x48] sm:$0xff]
      %v437 = vld [vmem:[%s406 + $0x50] sm:$0xff]
      %v438 = vld [vmem:[%s406 + $0x58] sm:$0xff]
      %v439 = vld [vmem:[%s406 + $0x60] sm:$0xff]
      %v440 = vld [vmem:[%s406 + $0x68] sm:$0xff]
      %v441 = vld [vmem:[%s406 + $0x70] sm:$0xff]
      %v442 = vld [vmem:[%s406 + $0x78] sm:$0xff]
      %v443 = vpack.c.bf16 %v428, %v427
      %v444 = vpack.c.bf16 %v430, %v429
      %v445 = vpack.c.bf16 %v432, %v431
      %v446 = vpack.c.bf16 %v434, %v433
      %v447 = vpack.c.bf16 %v436, %v435
      %v448 = vpack.c.bf16 %v438, %v437
      %v449 = vpack.c.bf16 %v440, %v439
      %v450 = vpack.c.bf16 %v442, %v441
      %v451 = vld [vmem:[%s2] sm:$0xf]
      %v452 = vld [vmem:[%s2 + $0x4] sm:$0xf]
      %v453 = vld [vmem:[%s3] sm:$0x1]
      %v455 = vlaneseq
      %v456 = vshrl.u32 %v455, 7
      %v457 = vsub.s32 0, %v456
      %v458 = vrot.slane %v453, %v457
      %v462 = vunpack.c.l.b16 %v451
      %v463 = vunpack.c.l.b16 %v452
      %v464 = vpack.c.b16 %v463, %v462
      %vm466 = vcmask 130048
      %v468 = vsel %vm466, %v443, 0
      %v471 = vsel %vm466, %v444, 0
      %v474 = vsel %vm466, %v445, 0
      %v477 = vsel %vm466, %v446, 0
      %v480 = vsel %vm466, %v447, 0
      %v483 = vsel %vm466, %v448, 0
      %v486 = vsel %vm466, %v449, 0
      %v489 = vsel %vm466, %v450, 0
      %491 = vmatprep.subr.bf16.mxu0 0
      %492 = vmatpush1.bf16.msra.mxu0 %v464
      %493 = vmatprep.subr.bf16.mxu0 0
      %494 = vmatpush1.bf16.msra.mxu0 0
      %495 = vmatprep.subr.bf16.mxu0 0
      %496 = vmatpush1.bf16.msra.mxu0 0
      %497 = vmatprep.subr.bf16.mxu0 0
      %498 = vmatpush1.bf16.msra.mxu0 0
      %499 = vmatprep.subr.bf16.mxu0 0
      %500 = vmatpush1.bf16.msra.mxu0 0
      %501 = vmatprep.subr.bf16.mxu0 0
      %502 = vmatpush1.bf16.msra.mxu0 0
      %503 = vmatprep.subr.bf16.mxu0 0
      %504 = vmatpush1.bf16.msra.mxu0 0
      %505 = vmatprep.subr.bf16.mxu0 0
      %506 = vmatpush1.bf16.msra.mxu0 0
      %507 = vmatprep.subr.bf16.mxu0 0
      %508 = vmatpush1.bf16.msra.mxu0 0
      %509 = vmatprep.subr.bf16.mxu0 0
      %510 = vmatpush1.bf16.msra.mxu0 0
      %511 = vmatprep.subr.bf16.mxu0 0
      %512 = vmatpush1.bf16.msra.mxu0 0
      %513 = vmatprep.subr.bf16.mxu0 0
      %514 = vmatpush1.bf16.msra.mxu0 0
      %515 = vmatprep.subr.bf16.mxu0 0
      %516 = vmatpush1.bf16.msra.mxu0 0
      %517 = vmatprep.subr.bf16.mxu0 0
      %518 = vmatpush1.bf16.msra.mxu0 0
      %519 = vmatprep.subr.bf16.mxu0 0
      %520 = vmatpush1.bf16.msra.mxu0 0
      %521 = vmatprep.subr.bf16.mxu0 0
      %522 = vmatpush1.bf16.msra.mxu0 0
      %523 = vmatprep.mubr.bf16.mxu0 0
      %524 = vmatmul.mubr.bf16.gmra.mrb[0].mxu0 %v468
      %v525 = vpop.f32.mrb[0].mxu0
      %v526 = vadd.f32 %v458, %v525
      %v527 = vpop.f32.mrb[0].mxu0
      %v528 = vpop.f32.mrb[0].mxu0
      %v529 = vadd.f32 %v458, %v528
      %v530 = vpop.f32.mrb[0].mxu0
      %531 = vmatprep.mubr.bf16.mxu0 0
      %532 = vmatmul.mubr.bf16.gmra.mrb[0].mxu0 %v471
      %v533 = vpop.f32.mrb[0].mxu0
      %v534 = vadd.f32 %v458, %v533
      %v535 = vpop.f32.mrb[0].mxu0
      %v536 = vpop.f32.mrb[0].mxu0
      %v537 = vadd.f32 %v458, %v536
      %v538 = vpop.f32.mrb[0].mxu0
      %539 = vmatprep.mubr.bf16.mxu0 0
      %540 = vmatmul.mubr.bf16.gmra.mrb[0].mxu0 %v474
      %v541 = vpop.f32.mrb[0].mxu0
      %v542 = vadd.f32 %v458, %v541
      %v543 = vpop.f32.mrb[0].mxu0
      %v544 = vpop.f32.mrb[0].mxu0
      %v545 = vadd.f32 %v458, %v544
      %v546 = vpop.f32.mrb[0].mxu0
      %547 = vmatprep.mubr.bf16.mxu0 0
      %548 = vmatmul.mubr.bf16.gmra.mrb[0].mxu0 %v477
      %v549 = vpop.f32.mrb[0].mxu0
      %v550 = vadd.f32 %v458, %v549
      %v551 = vpop.f32.mrb[0].mxu0
      %v552 = vpop.f32.mrb[0].mxu0
      %v553 = vadd.f32 %v458, %v552
      %v554 = vpop.f32.mrb[0].mxu0
      %555 = vmatprep.mubr.bf16.mxu0 0
      %556 = vmatmul.mubr.bf16.gmra.mrb[0].mxu0 %v480
      %v557 = vpop.f32.mrb[0].mxu0
      %v558 = vadd.f32 %v458, %v557
      %v559 = vpop.f32.mrb[0].mxu0
      %v560 = vpop.f32.mrb[0].mxu0
      %v561 = vadd.f32 %v458, %v560
      %v562 = vpop.f32.mrb[0].mxu0
      %563 = vmatprep.mubr.bf16.mxu0 0
      %564 = vmatmul.mubr.bf16.gmra.mrb[0].mxu0 %v483
      %v565 = vpop.f32.mrb[0].mxu0
      %v566 = vadd.f32 %v458, %v565
      %v567 = vpop.f32.mrb[0].mxu0
      %v568 = vpop.f32.mrb[0].mxu0
      %v569 = vadd.f32 %v458, %v568
      %v570 = vpop.f32.mrb[0].mxu0
      %571 = vmatprep.mubr.bf16.mxu0 0
      %572 = vmatmul.mubr.bf16.gmra.mrb[0].mxu0 %v486
      %v573 = vpop.f32.mrb[0].mxu0
      %v574 = vadd.f32 %v458, %v573
      %v575 = vpop.f32.mrb[0].mxu0
      %v576 = vpop.f32.mrb[0].mxu0
      %v577 = vadd.f32 %v458, %v576
      %v578 = vpop.f32.mrb[0].mxu0
      %579 = vmatprep.mubr.bf16.mxu0 0
      %580 = vmatmul.mubr.bf16.gmra.mrb[0].mxu0 %v489
      %v581 = vpop.f32.mrb[0].mxu0
      %v582 = vadd.f32 %v458, %v581
      %v583 = vpop.f32.mrb[0].mxu0
      %v584 = vpop.f32.mrb[0].mxu0
      %v585 = vadd.f32 %v458, %v584
      %v586 = vpop.f32.mrb[0].mxu0
      %587 = vdwg.mxu0
      %v588 = vtanh.pop %v526
      %v589 = vtanh.pop %v529
      %v590 = vtanh.pop %v534
      %v591 = vtanh.pop %v537
      %v592 = vtanh.pop %v542
      %v593 = vtanh.pop %v545
      %v594 = vtanh.pop %v550
      %v595 = vtanh.pop %v553
      %v596 = vtanh.pop %v558
      %v597 = vtanh.pop %v561
      %v598 = vtanh.pop %v566
      %v599 = vtanh.pop %v569
      %v600 = vtanh.pop %v574
      %v601 = vtanh.pop %v577
      %v602 = vtanh.pop %v582
      %v603 = vtanh.pop %v585
      %v604 = vpack.c.bf16 %v589, %v588
      %v605 = vpack.c.bf16 %v591, %v590
      %v606 = vpack.c.bf16 %v593, %v592
      %v607 = vpack.c.bf16 %v595, %v594
      %v608 = vpack.c.bf16 %v597, %v596
      %v609 = vpack.c.bf16 %v599, %v598
      %v610 = vpack.c.bf16 %v601, %v600
      %v611 = vpack.c.bf16 %v603, %v602
      %v612 = vld [vmem:[%s4] sm:$0xf]
      %v613 = vld [vmem:[%s4 + $0x4] sm:$0xf]
      %v614 = vld [vmem:[%s4 + $0x8] sm:$0xf]
      %v615 = vld [vmem:[%s4 + $0xc] sm:$0xf]
      %v616 = vld [vmem:[%s5] sm:$0x1]
      %v618 = vlaneseq
      %v619 = vshrl.u32 %v618, 7
      %v620 = vsub.s32 0, %v619
      %v621 = vrot.slane %v616, %v620
      %v627 = vunpack.c.l.b16 %v612
      %v628 = vunpack.c.l.b16 %v613
      %v629 = vunpack.c.l.b16 %v614
      %v630 = vunpack.c.l.b16 %v615
      %v631 = vpack.c.b16 %v628, %v627
      %v632 = vpack.c.b16 %v630, %v629
      %vm635 = vcmask 261120
      %v637 = vsel %vm635, %v604, 0
      %v640 = vsel %vm635, %v605, 0
      %v643 = vsel %vm635, %v606, 0
      %v646 = vsel %vm635, %v607, 0
      %v649 = vsel %vm635, %v608, 0
      %v652 = vsel %vm635, %v609, 0
      %v655 = vsel %vm635, %v610, 0
      %v658 = vsel %vm635, %v611, 0
      %660 = vmatprep.subr.bf16.mxu0 0
      %661 = vmatpush1.bf16.msra.mxu0 %v631
      %662 = vmatprep.subr.bf16.mxu0 0
      %663 = vmatpush1.bf16.msra.mxu0 %v632
      %664 = vmatprep.subr.bf16.mxu0 0
      %665 = vmatpush1.bf16.msra.mxu0 0
      %666 = vmatprep.subr.bf16.mxu0 0
      %667 = vmatpush1.bf16.msra.mxu0 0
      %668 = vmatprep.subr.bf16.mxu0 0
      %669 = vmatpush1.bf16.msra.mxu0 0
      %670 = vmatprep.subr.bf16.mxu0 0
      %671 = vmatpush1.bf16.msra.mxu0 0
      %672 = vmatprep.subr.bf16.mxu0 0
      %673 = vmatpush1.bf16.msra.mxu0 0
      %674 = vmatprep.subr.bf16.mxu0 0
      %675 = vmatpush1.bf16.msra.mxu0 0
      %676 = vmatprep.subr.bf16.mxu0 0
      %677 = vmatpush1.bf16.msra.mxu0 0
      %678 = vmatprep.subr.bf16.mxu0 0
      %679 = vmatpush1.bf16.msra.mxu0 0
      %680 = vmatprep.subr.bf16.mxu0 0
      %681 = vmatpush1.bf16.msra.mxu0 0
      %682 = vmatprep.subr.bf16.mxu0 0
      %683 = vmatpush1.bf16.msra.mxu0 0
      %684 = vmatprep.subr.bf16.mxu0 0
      %685 = vmatpush1.bf16.msra.mxu0 0
      %686 = vmatprep.subr.bf16.mxu0 0
      %687 = vmatpush1.bf16.msra.mxu0 0
      %688 = vmatprep.subr.bf16.mxu0 0
      %689 = vmatpush1.bf16.msra.mxu0 0
      %690 = vmatprep.subr.bf16.mxu0 0
      %691 = vmatpush1.bf16.msra.mxu0 0
      %692 = vmatprep.mubr.bf16.mxu0 0
      %693 = vmatmul.mubr.bf16.gmra.mrb[0].mxu0 %v637
      %v694 = vpop.f32.mrb[0].mxu0
      %v695 = vadd.f32 %v621, %v694
      %v696 = vpop.f32.mrb[0].mxu0
      %v697 = vpop.f32.mrb[0].mxu0
      %v698 = vadd.f32 %v621, %v697
      %v699 = vpop.f32.mrb[0].mxu0
      %700 = vmatprep.mubr.bf16.mxu0 0
      %701 = vmatmul.mubr.bf16.gmra.mrb[0].mxu0 %v640
      %v702 = vpop.f32.mrb[0].mxu0
      %v703 = vadd.f32 %v621, %v702
      %v704 = vpop.f32.mrb[0].mxu0
      %v705 = vpop.f32.mrb[0].mxu0
      %v706 = vadd.f32 %v621, %v705
      %v707 = vpop.f32.mrb[0].mxu0
      %708 = vmatprep.mubr.bf16.mxu0 0
      %709 = vmatmul.mubr.bf16.gmra.mrb[0].mxu0 %v643
      %v710 = vpop.f32.mrb[0].mxu0
      %v711 = vadd.f32 %v621, %v710
      %v712 = vpop.f32.mrb[0].mxu0
      %v713 = vpop.f32.mrb[0].mxu0
      %v714 = vadd.f32 %v621, %v713
      %v715 = vpop.f32.mrb[0].mxu0
      %716 = vmatprep.mubr.bf16.mxu0 0
      %717 = vmatmul.mubr.bf16.gmra.mrb[0].mxu0 %v646
      %v718 = vpop.f32.mrb[0].mxu0
      %v719 = vadd.f32 %v621, %v718
      %v720 = vpop.f32.mrb[0].mxu0
      %v721 = vpop.f32.mrb[0].mxu0
      %v722 = vadd.f32 %v621, %v721
      %v723 = vpop.f32.mrb[0].mxu0
      %724 = vmatprep.mubr.bf16.mxu0 0
      %725 = vmatmul.mubr.bf16.gmra.mrb[0].mxu0 %v649
      %v726 = vpop.f32.mrb[0].mxu0
      %v727 = vadd.f32 %v621, %v726
      %v728 = vpop.f32.mrb[0].mxu0
      %v729 = vpop.f32.mrb[0].mxu0
      %v730 = vadd.f32 %v621, %v729
      %v731 = vpop.f32.mrb[0].mxu0
      %732 = vmatprep.mubr.bf16.mxu0 0
      %733 = vmatmul.mubr.bf16.gmra.mrb[0].mxu0 %v652
      %v734 = vpop.f32.mrb[0].mxu0
      %v735 = vadd.f32 %v621, %v734
      %v736 = vpop.f32.mrb[0].mxu0
      %v737 = vpop.f32.mrb[0].mxu0
      %v738 = vadd.f32 %v621, %v737
      %v739 = vpop.f32.mrb[0].mxu0
      %740 = vmatprep.mubr.bf16.mxu0 0
      %741 = vmatmul.mubr.bf16.gmra.mrb[0].mxu0 %v655
      %v742 = vpop.f32.mrb[0].mxu0
      %v743 = vadd.f32 %v621, %v742
      %v744 = vpop.f32.mrb[0].mxu0
      %v745 = vpop.f32.mrb[0].mxu0
      %v746 = vadd.f32 %v621, %v745
      %v747 = vpop.f32.mrb[0].mxu0
      %748 = vmatprep.mubr.bf16.mxu0 0
      %749 = vmatmul.mubr.bf16.gmra.mrb[0].mxu0 %v658
      %v750 = vpop.f32.mrb[0].mxu0
      %v751 = vadd.f32 %v621, %v750
      %v752 = vpop.f32.mrb[0].mxu0
      %v753 = vpop.f32.mrb[0].mxu0
      %v754 = vadd.f32 %v621, %v753
      %v755 = vpop.f32.mrb[0].mxu0
      %756 = vdwg.mxu0
      %v757 = vtanh.pop %v695
      %v758 = vtanh.pop %v698
      %v759 = vtanh.pop %v703
      %v760 = vtanh.pop %v706
      %v761 = vtanh.pop %v711
      %v762 = vtanh.pop %v714
      %v763 = vtanh.pop %v719
      %v764 = vtanh.pop %v722
      %v765 = vtanh.pop %v727
      %v766 = vtanh.pop %v730
      %v767 = vtanh.pop %v735
      %v768 = vtanh.pop %v738
      %v769 = vtanh.pop %v743
      %v770 = vtanh.pop %v746
      %v771 = vtanh.pop %v751
      %v772 = vtanh.pop %v754
      %v773 = vld [vmem:[%s6] sm:$0xff]
      %v774 = vld [vmem:[%s6 + $0x8] sm:$0xff]
      %v775 = vld [vmem:[%s6 + $0x10] sm:$0xff]
      %v776 = vld [vmem:[%s6 + $0x18] sm:$0xff]
      %v777 = vld [vmem:[%s7] sm:$0x1]
      %v779 = vlaneseq
      %v780 = vshrl.u32 %v779, 7
      %v781 = vsub.s32 0, %v780
      %v782 = vrot.slane %v777, %v781
      %v785 = vsel %vm635, %v757, 0
      %v788 = vsel %vm635, %v758, 0
      %v791 = vsel %vm635, %v759, 0
      %v794 = vsel %vm635, %v760, 0
      %v797 = vsel %vm635, %v761, 0
      %v800 = vsel %vm635, %v762, 0
      %v803 = vsel %vm635, %v763, 0
      %v806 = vsel %vm635, %v764, 0
      %v809 = vsel %vm635, %v765, 0
      %v812 = vsel %vm635, %v766, 0
      %v815 = vsel %vm635, %v767, 0
      %v818 = vsel %vm635, %v768, 0
      %v821 = vsel %vm635, %v769, 0
      %v824 = vsel %vm635, %v770, 0
      %v827 = vsel %vm635, %v771, 0
      %v830 = vsel %vm635, %v772, 0
      %832 = vmatprep.subr.mxu0 0.0
      %833 = vmatpush1.msra.mxu0 %v773
      %834 = vmatprep.subr.mxu0 0.0
      %835 = vmatpush1.msra.mxu0 %v774
      %836 = vmatprep.subr.mxu0 0.0
      %837 = vmatpush1.msra.mxu0 %v775
      %838 = vmatprep.subr.mxu0 0.0
      %839 = vmatpush1.msra.mxu0 %v776
      %840 = vmatprep.subr.mxu0 0.0
      %841 = vmatpush1.msra.mxu0 0.0
      %842 = vmatprep.subr.mxu0 0.0
      %843 = vmatpush1.msra.mxu0 0.0
      %844 = vmatprep.subr.mxu0 0.0
      %845 = vmatpush1.msra.mxu0 0.0
      %846 = vmatprep.subr.mxu0 0.0
      %847 = vmatpush1.msra.mxu0 0.0
      %848 = vmatprep.subr.mxu0 0.0
      %849 = vmatpush1.msra.mxu0 0.0
      %850 = vmatprep.subr.mxu0 0.0
      %851 = vmatpush1.msra.mxu0 0.0
      %852 = vmatprep.subr.mxu0 0.0
      %853 = vmatpush1.msra.mxu0 0.0
      %854 = vmatprep.subr.mxu0 0.0
      %855 = vmatpush1.msra.mxu0 0.0
      %856 = vmatprep.subr.mxu0 0.0
      %857 = vmatpush1.msra.mxu0 0.0
      %858 = vmatprep.subr.mxu0 0.0
      %859 = vmatpush1.msra.mxu0 0.0
      %860 = vmatprep.subr.mxu0 0.0
      %861 = vmatpush1.msra.mxu0 0.0
      %862 = vmatprep.subr.mxu0 0.0
      %863 = vmatpush1.msra.mxu0 0.0
      %864 = vmatprep.subr.mxu0 0.0
      %865 = vmatpush1.msra.mxu0 0.0
      %866 = vmatprep.subr.mxu0 0.0
      %867 = vmatpush1.msra.mxu0 0.0
      %868 = vmatprep.subr.mxu0 0.0
      %869 = vmatpush1.msra.mxu0 0.0
      %870 = vmatprep.subr.mxu0 0.0
      %871 = vmatpush1.msra.mxu0 0.0
      %872 = vmatprep.subr.mxu0 0.0
      %873 = vmatpush1.msra.mxu0 0.0
      %874 = vmatprep.subr.mxu0 0.0
      %875 = vmatpush1.msra.mxu0 0.0
      %876 = vmatprep.subr.mxu0 0.0
      %877 = vmatpush1.msra.mxu0 0.0
      %878 = vmatprep.subr.mxu0 0.0
      %879 = vmatpush1.msra.mxu0 0.0
      %880 = vmatprep.subr.mxu0 0.0
      %881 = vmatpush1.msra.mxu0 0.0
      %882 = vmatprep.subr.mxu0 0.0
      %883 = vmatpush1.msra.mxu0 0.0
      %884 = vmatprep.subr.mxu0 0.0
      %885 = vmatpush1.msra.mxu0 0.0
      %886 = vmatprep.subr.mxu0 0.0
      %887 = vmatpush1.msra.mxu0 0.0
      %888 = vmatprep.subr.mxu0 0.0
      %889 = vmatpush1.msra.mxu0 0.0
      %890 = vmatprep.subr.mxu0 0.0
      %891 = vmatpush1.msra.mxu0 0.0
      %892 = vmatprep.subr.mxu0 0.0
      %893 = vmatpush1.msra.mxu0 0.0
      %894 = vmatprep.subr.mxu0 0.0
      %895 = vmatpush1.msra.mxu0 0.0
      %896 = vmatprep.mubr.f32.mxu0 0.0
      %897 = vmatmul.mubr.f32.gmra.mrb[0].mxu0 %v785
      %v898 = vpop.f32.mrb[0].mxu0
      %v899 = vadd.f32 %v782, %v898
      %v900 = vpop.f32.mrb[0].mxu0
      %901 = vmatprep.mubr.f32.mxu0 0.0
      %902 = vmatmul.mubr.f32.gmra.mrb[0].mxu0 %v788
      %v903 = vpop.f32.mrb[0].mxu0
      %v904 = vadd.f32 %v782, %v903
      %v905 = vpop.f32.mrb[0].mxu0
      %906 = vmatprep.mubr.f32.mxu0 0.0
      %907 = vmatmul.mubr.f32.gmra.mrb[0].mxu0 %v791
      %v908 = vpop.f32.mrb[0].mxu0
      %v909 = vadd.f32 %v782, %v908
      %v910 = vpop.f32.mrb[0].mxu0
      %911 = vmatprep.mubr.f32.mxu0 0.0
      %912 = vmatmul.mubr.f32.gmra.mrb[0].mxu0 %v794
      %v913 = vpop.f32.mrb[0].mxu0
      %v914 = vadd.f32 %v782, %v913
      %v915 = vpop.f32.mrb[0].mxu0
      %916 = vmatprep.mubr.f32.mxu0 0.0
      %917 = vmatmul.mubr.f32.gmra.mrb[0].mxu0 %v797
      %v918 = vpop.f32.mrb[0].mxu0
      %v919 = vadd.f32 %v782, %v918
      %v920 = vpop.f32.mrb[0].mxu0
      %921 = vmatprep.mubr.f32.mxu0 0.0
      %922 = vmatmul.mubr.f32.gmra.mrb[0].mxu0 %v800
      %v923 = vpop.f32.mrb[0].mxu0
      %v924 = vadd.f32 %v782, %v923
      %v925 = vpop.f32.mrb[0].mxu0
      %926 = vmatprep.mubr.f32.mxu0 0.0
      %927 = vmatmul.mubr.f32.gmra.mrb[0].mxu0 %v803
      %v928 = vpop.f32.mrb[0].mxu0
      %v929 = vadd.f32 %v782, %v928
      %v930 = vpop.f32.mrb[0].mxu0
      %931 = vmatprep.mubr.f32.mxu0 0.0
      %932 = vmatmul.mubr.f32.gmra.mrb[0].mxu0 %v806
      %v933 = vpop.f32.mrb[0].mxu0
      %v934 = vadd.f32 %v782, %v933
      %v935 = vpop.f32.mrb[0].mxu0
      %936 = vmatprep.mubr.f32.mxu0 0.0
      %937 = vmatmul.mubr.f32.gmra.mrb[0].mxu0 %v809
      %v938 = vpop.f32.mrb[0].mxu0
      %v939 = vadd.f32 %v782, %v938
      %v940 = vpop.f32.mrb[0].mxu0
      %941 = vmatprep.mubr.f32.mxu0 0.0
      %942 = vmatmul.mubr.f32.gmra.mrb[0].mxu0 %v812
      %v943 = vpop.f32.mrb[0].mxu0
      %v944 = vadd.f32 %v782, %v943
      %v945 = vpop.f32.mrb[0].mxu0
      %946 = vmatprep.mubr.f32.mxu0 0.0
      %947 = vmatmul.mubr.f32.gmra.mrb[0].mxu0 %v815
      %v948 = vpop.f32.mrb[0].mxu0
      %v949 = vadd.f32 %v782, %v948
      %v950 = vpop.f32.mrb[0].mxu0
      %951 = vmatprep.mubr.f32.mxu0 0.0
      %952 = vmatmul.mubr.f32.gmra.mrb[0].mxu0 %v818
      %v953 = vpop.f32.mrb[0].mxu0
      %v954 = vadd.f32 %v782, %v953
      %v955 = vpop.f32.mrb[0].mxu0
      %956 = vmatprep.mubr.f32.mxu0 0.0
      %957 = vmatmul.mubr.f32.gmra.mrb[0].mxu0 %v821
      %v958 = vpop.f32.mrb[0].mxu0
      %v959 = vadd.f32 %v782, %v958
      %v960 = vpop.f32.mrb[0].mxu0
      %961 = vmatprep.mubr.f32.mxu0 0.0
      %962 = vmatmul.mubr.f32.gmra.mrb[0].mxu0 %v824
      %v963 = vpop.f32.mrb[0].mxu0
      %v964 = vadd.f32 %v782, %v963
      %v965 = vpop.f32.mrb[0].mxu0
      %966 = vmatprep.mubr.f32.mxu0 0.0
      %967 = vmatmul.mubr.f32.gmra.mrb[0].mxu0 %v827
      %v968 = vpop.f32.mrb[0].mxu0
      %v969 = vadd.f32 %v782, %v968
      %v970 = vpop.f32.mrb[0].mxu0
      %971 = vmatprep.mubr.f32.mxu0 0.0
      %972 = vmatmul.mubr.f32.gmra.mrb[0].mxu0 %v830
      %v973 = vpop.f32.mrb[0].mxu0
      %v974 = vadd.f32 %v782, %v973
      %v975 = vpop.f32.mrb[0].mxu0
      %976 = vdwg.mxu0
      %vm977 = vcmask 64512
      %978 = vst.msk [vmem:[%s418] sm:$0xff] %vm977, %v899
      %979 = vst.msk [vmem:[%s418 + $0x8] sm:$0xff] %vm977, %v904
      %980 = vst.msk [vmem:[%s418 + $0x10] sm:$0xff] %vm977, %v909
      %981 = vst.msk [vmem:[%s418 + $0x18] sm:$0xff] %vm977, %v914
      %982 = vst.msk [vmem:[%s418 + $0x20] sm:$0xff] %vm977, %v919
      %983 = vst.msk [vmem:[%s418 + $0x28] sm:$0xff] %vm977, %v924
      %984 = vst.msk [vmem:[%s418 + $0x30] sm:$0xff] %vm977, %v929
      %985 = vst.msk [vmem:[%s418 + $0x38] sm:$0xff] %vm977, %v934
      %986 = vst.msk [vmem:[%s418 + $0x40] sm:$0xff] %vm977, %v939
      %987 = vst.msk [vmem:[%s418 + $0x48] sm:$0xff] %vm977, %v944
      %988 = vst.msk [vmem:[%s418 + $0x50] sm:$0xff] %vm977, %v949
      %989 = vst.msk [vmem:[%s418 + $0x58] sm:$0xff] %vm977, %v954
      %990 = vst.msk [vmem:[%s418 + $0x60] sm:$0xff] %vm977, %v959
      %991 = vst.msk [vmem:[%s418 + $0x68] sm:$0xff] %vm977, %v964
      %992 = vst.msk [vmem:[%s418 + $0x70] sm:$0xff] %vm977, %v969
      %993 = vst.msk [vmem:[%s418 + $0x78] sm:$0xff] %vm977, %v974
      %v994 = vld [vmem:[%s412] sm:$0xff]
      %v995 = vld [vmem:[%s412 + $0x8] sm:$0xff]
      %v996 = vld [vmem:[%s412 + $0x10] sm:$0xff]
      %v997 = vld [vmem:[%s412 + $0x18] sm:$0xff]
      %v998 = vld [vmem:[%s412 + $0x20] sm:$0xff]
      %v999 = vld [vmem:[%s412 + $0x28] sm:$0xff]
      %v1000 = vld [vmem:[%s412 + $0x30] sm:$0xff]
      %v1001 = vld [vmem:[%s412 + $0x38] sm:$0xff]
      %v1002 = vld [vmem:[%s412 + $0x40] sm:$0xff]
      %v1003 = vld [vmem:[%s412 + $0x48] sm:$0xff]
      %v1004 = vld [vmem:[%s412 + $0x50] sm:$0xff]
      %v1005 = vld [vmem:[%s412 + $0x58] sm:$0xff]
      %v1006 = vld [vmem:[%s412 + $0x60] sm:$0xff]
      %v1007 = vld [vmem:[%s412 + $0x68] sm:$0xff]
      %v1008 = vld [vmem:[%s412 + $0x70] sm:$0xff]
      %v1009 = vld [vmem:[%s412 + $0x78] sm:$0xff]
      %v1010 = vsub.f32 %v994, %v899
      %v1011 = vsub.f32 %v995, %v904
      %v1012 = vsub.f32 %v996, %v909
      %v1013 = vsub.f32 %v997, %v914
      %v1014 = vsub.f32 %v998, %v919
      %v1015 = vsub.f32 %v999, %v924
      %v1016 = vsub.f32 %v1000, %v929
      %v1017 = vsub.f32 %v1001, %v934
      %v1018 = vsub.f32 %v1002, %v939
      %v1019 = vsub.f32 %v1003, %v944
      %v1020 = vsub.f32 %v1004, %v949
      %v1021 = vsub.f32 %v1005, %v954
      %v1022 = vsub.f32 %v1006, %v959
      %v1023 = vsub.f32 %v1007, %v964
      %v1024 = vsub.f32 %v1008, %v969
      %v1025 = vsub.f32 %v1009, %v974
      %v1026 = vld [vmem:[%s8] sm:$0x1]
      %v1028 = vlaneseq
      %v1029 = vshrl.u32 %v1028, 7
      %v1030 = vsub.s32 0, %v1029
      %v1031 = vrot.slane %v1026, %v1030
      %v1033 = vmul.f32 %v1010, %v1031
      %v1034 = vmul.f32 %v1011, %v1031
      %v1035 = vmul.f32 %v1012, %v1031
      %v1036 = vmul.f32 %v1013, %v1031
      %v1037 = vmul.f32 %v1014, %v1031
      %v1038 = vmul.f32 %v1015, %v1031
      %v1039 = vmul.f32 %v1016, %v1031
      %v1040 = vmul.f32 %v1017, %v1031
      %v1041 = vmul.f32 %v1018, %v1031
      %v1042 = vmul.f32 %v1019, %v1031
      %v1043 = vmul.f32 %v1020, %v1031
      %v1044 = vmul.f32 %v1021, %v1031
      %v1045 = vmul.f32 %v1022, %v1031
      %v1046 = vmul.f32 %v1023, %v1031
      %v1047 = vmul.f32 %v1024, %v1031
      %v1048 = vmul.f32 %v1025, %v1031
      %v1049 = vmul.f32 %v1033, %v1033
      %v1050 = vmul.f32 %v1034, %v1034
      %v1051 = vmul.f32 %v1035, %v1035
      %v1052 = vmul.f32 %v1036, %v1036
      %v1053 = vmul.f32 %v1037, %v1037
      %v1054 = vmul.f32 %v1038, %v1038
      %v1055 = vmul.f32 %v1039, %v1039
      %v1056 = vmul.f32 %v1040, %v1040
      %v1057 = vmul.f32 %v1041, %v1041
      %v1058 = vmul.f32 %v1042, %v1042
      %v1059 = vmul.f32 %v1043, %v1043
      %v1060 = vmul.f32 %v1044, %v1044
      %v1061 = vmul.f32 %v1045, %v1045
      %v1062 = vmul.f32 %v1046, %v1046
      %v1063 = vmul.f32 %v1047, %v1047
      %v1064 = vmul.f32 %v1048, %v1048
      %v1065 = vmul.f32 %v1049, -0.5
      %v1066 = vmul.f32 %v1050, -0.5
      %v1067 = vmul.f32 %v1051, -0.5
      %v1068 = vmul.f32 %v1052, -0.5
      %v1069 = vmul.f32 %v1053, -0.5
      %v1070 = vmul.f32 %v1054, -0.5
      %v1071 = vmul.f32 %v1055, -0.5
      %v1072 = vmul.f32 %v1056, -0.5
      %v1073 = vmul.f32 %v1057, -0.5
      %v1074 = vmul.f32 %v1058, -0.5
      %v1075 = vmul.f32 %v1059, -0.5
      %v1076 = vmul.f32 %v1060, -0.5
      %v1077 = vmul.f32 %v1061, -0.5
      %v1078 = vmul.f32 %v1062, -0.5
      %v1079 = vmul.f32 %v1063, -0.5
      %v1080 = vmul.f32 %v1064, -0.5
      %v1081 = vld [vmem:[%s9] sm:$0x1]
      %v1083 = vlaneseq
      %v1084 = vshrl.u32 %v1083, 7
      %v1085 = vsub.s32 0, %v1084
      %v1086 = vrot.slane %v1081, %v1085
      %v1088 = vadd.f32 %v1065, %v1086
      %v1089 = vadd.f32 %v1066, %v1086
      %v1090 = vadd.f32 %v1067, %v1086
      %v1091 = vadd.f32 %v1068, %v1086
      %v1092 = vadd.f32 %v1069, %v1086
      %v1093 = vadd.f32 %v1070, %v1086
      %v1094 = vadd.f32 %v1071, %v1086
      %v1095 = vadd.f32 %v1072, %v1086
      %v1096 = vadd.f32 %v1073, %v1086
      %v1097 = vadd.f32 %v1074, %v1086
      %v1098 = vadd.f32 %v1075, %v1086
      %v1099 = vadd.f32 %v1076, %v1086
      %v1100 = vadd.f32 %v1077, %v1086
      %v1101 = vadd.f32 %v1078, %v1086
      %v1102 = vadd.f32 %v1079, %v1086
      %v1103 = vadd.f32 %v1080, %v1086
      %v1104 = vsel %vm977, %v1088, 0.0
      %1105 = vadd.xlane.f32.xlu0 %v1104
      %v1106 = vpop.xlane.xlu0 %1105
      %v1107 = vsel %vm977, %v1089, 0.0
      %1108 = vadd.xlane.f32.xlu0 %v1107
      %v1109 = vpop.xlane.xlu0 %1108
      %v1110 = vsel %vm977, %v1090, 0.0
      %1111 = vadd.xlane.f32.xlu0 %v1110
      %v1112 = vpop.xlane.xlu0 %1111
      %v1113 = vsel %vm977, %v1091, 0.0
      %1114 = vadd.xlane.f32.xlu0 %v1113
      %v1115 = vpop.xlane.xlu0 %1114
      %v1116 = vsel %vm977, %v1092, 0.0
      %1117 = vadd.xlane.f32.xlu0 %v1116
      %v1118 = vpop.xlane.xlu0 %1117
      %v1119 = vsel %vm977, %v1093, 0.0
      %1120 = vadd.xlane.f32.xlu0 %v1119
      %v1121 = vpop.xlane.xlu0 %1120
      %v1122 = vsel %vm977, %v1094, 0.0
      %1123 = vadd.xlane.f32.xlu0 %v1122
      %v1124 = vpop.xlane.xlu0 %1123
      %v1125 = vsel %vm977, %v1095, 0.0
      %1126 = vadd.xlane.f32.xlu0 %v1125
      %v1127 = vpop.xlane.xlu0 %1126
      %v1128 = vsel %vm977, %v1096, 0.0
      %1129 = vadd.xlane.f32.xlu0 %v1128
      %v1130 = vpop.xlane.xlu0 %1129
      %v1131 = vsel %vm977, %v1097, 0.0
      %1132 = vadd.xlane.f32.xlu0 %v1131
      %v1133 = vpop.xlane.xlu0 %1132
      %v1134 = vsel %vm977, %v1098, 0.0
      %1135 = vadd.xlane.f32.xlu0 %v1134
      %v1136 = vpop.xlane.xlu0 %1135
      %v1137 = vsel %vm977, %v1099, 0.0
      %1138 = vadd.xlane.f32.xlu0 %v1137
      %v1139 = vpop.xlane.xlu0 %1138
      %v1140 = vsel %vm977, %v1100, 0.0
      %1141 = vadd.xlane.f32.xlu0 %v1140
      %v1142 = vpop.xlane.xlu0 %1141
      %v1143 = vsel %vm977, %v1101, 0.0
      %1144 = vadd.xlane.f32.xlu0 %v1143
      %v1145 = vpop.xlane.xlu0 %1144
      %v1146 = vsel %vm977, %v1102, 0.0
      %1147 = vadd.xlane.f32.xlu0 %v1146
      %v1148 = vpop.xlane.xlu0 %1147
      %v1149 = vsel %vm977, %v1103, 0.0
      %1150 = vadd.xlane.f32.xlu0 %v1149
      %v1151 = vpop.xlane.xlu0 %1150
      %vm1152 = vcmask 7168
      %1153 = vst.msk [vmem:[%s424] sm:$0xff] %vm1152, %v1106
      %1154 = vst.msk [vmem:[%s424 + $0x8] sm:$0xff] %vm1152, %v1109
      %1155 = vst.msk [vmem:[%s424 + $0x10] sm:$0xff] %vm1152, %v1112
      %1156 = vst.msk [vmem:[%s424 + $0x18] sm:$0xff] %vm1152, %v1115
      %1157 = vst.msk [vmem:[%s424 + $0x20] sm:$0xff] %vm1152, %v1118
      %1158 = vst.msk [vmem:[%s424 + $0x28] sm:$0xff] %vm1152, %v1121
      %1159 = vst.msk [vmem:[%s424 + $0x30] sm:$0xff] %vm1152, %v1124
      %1160 = vst.msk [vmem:[%s424 + $0x38] sm:$0xff] %vm1152, %v1127
      %1161 = vst.msk [vmem:[%s424 + $0x40] sm:$0xff] %vm1152, %v1130
      %1162 = vst.msk [vmem:[%s424 + $0x48] sm:$0xff] %vm1152, %v1133
      %1163 = vst.msk [vmem:[%s424 + $0x50] sm:$0xff] %vm1152, %v1136
      %1164 = vst.msk [vmem:[%s424 + $0x58] sm:$0xff] %vm1152, %v1139
      %1165 = vst.msk [vmem:[%s424 + $0x60] sm:$0xff] %vm1152, %v1142
      %1166 = vst.msk [vmem:[%s424 + $0x68] sm:$0xff] %vm1152, %v1145
      %1167 = vst.msk [vmem:[%s424 + $0x70] sm:$0xff] %vm1152, %v1148
      %1168 = vst.msk [vmem:[%s424 + $0x78] sm:$0xff] %vm1152, %v1151
      %s1169 = smul.u32 16, %s23
      %p1170 = scmp.lt.s32.totalorder %s1169, 31
      %s1171 = scalar_select %p1170, %s1169, 31
      %s1172 = smul.addr %s1171, 8
      %s1173 = scalar_lea.vmem %s10, %s1172
      %s1174 = smul.u32 16, %s23
      %p1175 = scmp.lt.s32.totalorder %s1174, 31
      %s1176 = scalar_select %p1175, %s1174, 31
      %s1177 = smul.addr %s1176, 8
      %s1178 = scalar_lea.vmem %s11, %s1177
      // Predicated region
      $region61: #{tpu_custom_call.1} parent=59 // pred_check
        %p1179 = pneg %p261
      $region62: #{tpu_custom_call.1} parent=59 // pred_check_branch
        %1181 = sbr.rel (%p1179) target = $region64
      $region63: #{tpu_custom_call.1} parent=59 // pred_region
        %s1182 = smul.u32 16, %s23
      $region64: #{tpu_custom_call.1} parent=59 // pred_fallthru
        _
      // Predicated region
      $region65: #{tpu_custom_call.1} parent=59 // pred_check
        %p1183 = pneg %p287
      $region66: #{tpu_custom_call.1} parent=59 // pred_check_branch
        %1185 = sbr.rel (%p1183) target = $region68
      $region67: #{tpu_custom_call.1} parent=59 // pred_region
        %s1186 = smul.u32 16, %s23
      $region68: #{tpu_custom_call.1} parent=59 // pred_fallthru
        _
    $region60: #{tpu_custom_call.1} parent=5 // pred_fallthru
      _
    %p1187 = scmp.le.s32.totalorder 2, %s18
    // Predicated region
    $region69: #{tpu_custom_call.1} parent=5 // pred_check
      %p1188 = pneg %p1187
    $region70: #{tpu_custom_call.1} parent=5 // pred_check_branch
      %1190 = sbr.rel (%p1188) target = $region72
    $region71: #{tpu_custom_call.1} parent=5 // pred_region
      %s1191 = ssub.s32 %s18, 2
      // Predicated region
      $region73: #{tpu_custom_call.1} parent=71 // pred_check
        %p1192 = pneg %p267
      $region74: #{tpu_custom_call.1} parent=71 // pred_check_branch
        %1194 = sbr.rel (%p1192) target = $region76
      $region75: #{tpu_custom_call.1} parent=71 // pred_region
        %s1195 = smul.u32 16, %s24
        %p1196 = scmp.lt.s32.totalorder %s1195, 31
        %s1197 = scalar_select %p1196, %s1195, 31
        %s1198 = smul.addr %s1197, 8
        %s1199 = scalar_lea.vmem %s10, %s1198
      $region76: #{tpu_custom_call.1} parent=71 // pred_fallthru
        _
      // Predicated region
      $region77: #{tpu_custom_call.1} parent=71 // pred_check
        %p1200 = pneg %p293
      $region78: #{tpu_custom_call.1} parent=71 // pred_check_branch
        %1202 = sbr.rel (%p1200) target = $region80
      $region79: #{tpu_custom_call.1} parent=71 // pred_region
        %s1203 = smul.u32 16, %s24
        %p1204 = scmp.lt.s32.totalorder %s1203, 31
        %s1205 = scalar_select %p1204, %s1203, 31
        %s1206 = smul.addr %s1205, 8
        %s1207 = scalar_lea.vmem %s11, %s1206
      $region80: #{tpu_custom_call.1} parent=71 // pred_fallthru
        _
    $region72: #{tpu_custom_call.1} parent=5 // pred_fallthru
      _
  $region6: #{tpu_custom_call.1} parent=0 // loop_footer
    %s22 = sadd.s32 1, %s18
  $region7: #{tpu_custom_call.1} parent=0 // loop_footer_branch
    %17 = sbr.rel target = $region3
  $region8: #{tpu_custom_call.1} parent=0 // loop_exit
    _

</llo_original>
